<compile_context>
chip_gen: v7x
topology: tpu7x:2x2x1
jax: 0.10.0
libtpu: 0.0.40
codegen_flags: <defaults>
</compile_context>

<pallas_src>
import functools

import jax
import jax.numpy as jnp
from jax import lax
from jax.experimental import pallas as pl
from jax.experimental.pallas import tpu as pltpu


def _round_up(n, m):
    return (n + m - 1) // m * m


# Conservative VMEM working-set target: fits v7x (64 MiB / TensorCore) with
# headroom; v5e/v6e (128 MiB) have slack.  Used only for tile sizing.
_VMEM_TARGET_BYTES = 48 * 1024 * 1024
# Above this, the (single-buffered) resident weight stack is considered too
# big and we switch to the layer-streaming kernel.
_RESIDENT_WEIGHT_LIMIT_BYTES = 32 * 1024 * 1024


# -----------------------------------------------------------------------------
# One-time parameter preprocessing (hoist pad / transpose / cast out of forward)
# -----------------------------------------------------------------------------
def prepare_cross_params(weights, biases, *, param_dtype=None):
    """Prepare DCN-v2 cross-network parameters for the Pallas kernel.

    weights: (L, d, d) in nn.Linear convention (out_features, in_features)
    biases:  (L, d)
    param_dtype: optional dtype to cast params to (jnp.bfloat16 recommended
        for real sizes; accumulation stays f32 in the kernel).

    Returns:
      w_t_padded: (L, d_pad, d_pad) with w_t_padded[l] == W_l^T (zero-padded)
      b_padded:   (L, 1, d_pad)
    Call this once at model init, not per forward.
    """
    L, d, _ = weights.shape
    d_pad = _round_up(max(d, 128), 128)
    w_t = jnp.transpose(weights, (0, 2, 1))            # store W^T -> canonical matmul
    b = biases
    if d_pad != d:
        w_t = jnp.pad(w_t, ((0, 0), (0, d_pad - d), (0, d_pad - d)))
        b = jnp.pad(b, ((0, 0), (0, d_pad - d)))
    if param_dtype is not None:
        w_t = w_t.astype(param_dtype)
        b = b.astype(param_dtype)
    return w_t, b.reshape(L, 1, d_pad)


# -----------------------------------------------------------------------------
# Kernels
# -----------------------------------------------------------------------------
def _cross_kernel_resident(x0_ref, w_ref, b_ref, out_ref, *, num_layers):
    """All L weight matrices resident in VMEM; unrolled layer loop."""
    x0 = x0_ref[...].astype(jnp.float32)                  # (tb, d_pad) f32, loaded once
    w_dtype = w_ref.dtype

    def layer(l, x):
        w_t = w_ref[l]                                    # (d_pad, d_pad) == W_l^T
        b = b_ref[l]                                      # (1, d_pad)
        lhs = x if w_dtype == jnp.float32 else x.astype(w_dtype)
        xw = lax.dot_general(
            lhs, w_t,
            dimension_numbers=(((1,), (0,)), ((), ())),   # canonical: x @ W^T
            preferred_element_type=jnp.float32,
        ) + b.astype(jnp.float32)                         # (tb, d_pad) f32
        return x + x0 * xw                                # x_{l+1}

    x = lax.fori_loop(0, num_layers, layer, x0, unroll=True)
    out_ref[...] = x.astype(out_ref.dtype)                # single lane-dense store


def _cross_kernel_streamed(x0_ref, w_ref, b_ref, out_ref, x_sc):
    """Layer-streaming variant: grid=(batch_tiles, L); weights streamed per layer."""
    l = pl.program_id(1)
    x0 = x0_ref[...].astype(jnp.float32)                  # block index constant over l

    @pl.when(l == 0)
    def _():
        x_sc[...] = x0

    x = x_sc[...]
    w_t = w_ref[0]                                        # (d_pad, d_pad) == W_l^T
    lhs = x if w_ref.dtype == jnp.float32 else x.astype(w_ref.dtype)
    xw = lax.dot_general(
        lhs, w_t,
        dimension_numbers=(((1,), (0,)), ((), ())),
        preferred_element_type=jnp.float32,
    ) + b_ref[0].astype(jnp.float32)
    x_new = x + x0 * xw
    x_sc[...] = x_new

    @pl.when(l == pl.num_programs(1) - 1)
    def _():
        out_ref[...] = x_new.astype(out_ref.dtype)


# -----------------------------------------------------------------------------
# Wrapper
# -----------------------------------------------------------------------------
def cross_network_v2(x, w_t_padded, b_padded, *, block_b=None,
                     force_stream_layers=None):
    """
    x:          (B, d) activations (f32 or bf16)
    w_t_padded: (L, d_pad, d_pad) from prepare_cross_params (pre-transposed/padded)
    b_padded:   (L, 1, d_pad)
    returns:    (B, d) == x_L
    """
    B, d = x.shape
    L, d_pad, _ = w_t_padded.shape
    assert d_pad >= d and d_pad % 128 == 0, "use prepare_cross_params for weights"

    x_bytes = x.dtype.itemsize
    w_bytes = w_t_padded.dtype.itemsize
    weight_stack_bytes = L * d_pad * d_pad * w_bytes
    bias_stack_bytes = L * d_pad * w_bytes

    stream_layers = (weight_stack_bytes > _RESIDENT_WEIGHT_LIMIT_BYTES
                     if force_stream_layers is None else bool(force_stream_layers))

    # ---- batch tile size -----------------------------------------------------
    if block_b is None:
        if B >= 256:
            # MXU-aligned (multiple of 256) tiles, sized against VMEM budget
            # remaining after the resident weights.
            resident_w = (2 * d_pad * d_pad * w_bytes if stream_layers
                          else weight_stack_bytes)
            per_row = 2 * d_pad * 2 * x_bytes + 4 * d_pad * 4  # 2-buf in+out + f32 temps
            budget = max(_VMEM_TARGET_BYTES - resident_w, 8 << 20)
            block_b = int(max(256, min(1024, (budget // per_row) // 256 * 256)))
        else:
            align = 16 if x.dtype == jnp.bfloat16 else 8
            block_b = _round_up(B, align)
    B_pad = _round_up(B, block_b)

    x_p = x if (B_pad == B and d_pad == d) else jnp.pad(
        x, ((0, B_pad - B), (0, d_pad - d)))
    grid_b = B_pad // block_b

    # ---- VMEM budget hint ------------------------------------------------------
    io_bytes = 2 * block_b * d_pad * 2 * x_bytes            # double-buffered x0 + out tiles
    temp_bytes = 4 * block_b * d_pad * 4                    # x0 / carry / xw f32 temps
    if stream_layers:
        w_resident = 2 * d_pad * d_pad * w_bytes + 2 * d_pad * w_bytes
        temp_bytes += block_b * d_pad * 4                    # x carry scratch
    else:
        w_resident = weight_stack_bytes + bias_stack_bytes   # single-buffered
    vmem_limit = int(min(max(w_resident + io_bytes + temp_bytes + (4 << 20),
                             16 << 20), 128 << 20))

    # ---- cost estimate (helps XLA schedule surrounding ops) --------------------
    cost = pl.CostEstimate(
        flops=int(2 * L * B_pad * d_pad * d_pad + 3 * L * B_pad * d_pad),
        transcendentals=0,
        bytes_accessed=int(weight_stack_bytes + bias_stack_bytes
                           + 2 * B_pad * d_pad * x_bytes),
    )

    out_shape = jax.ShapeDtypeStruct((B_pad, d_pad), x.dtype)

    def _call(weight_mode):
        if stream_layers:
            grid = (grid_b, L)
            in_specs = [
                pl.BlockSpec((block_b, d_pad), lambda i, l: (i, 0)),
                pl.BlockSpec((1, d_pad, d_pad), lambda i, l: (l, 0, 0)),
                pl.BlockSpec((1, 1, d_pad), lambda i, l: (l, 0, 0)),
            ]
            out_specs = pl.BlockSpec((block_b, d_pad), lambda i, l: (i, 0))
            kernel = _cross_kernel_streamed
            scratch = [pltpu.VMEM((block_b, d_pad), jnp.float32)]
            dims = ("parallel", "arbitrary")
        else:
            grid = (grid_b,)
            in_specs = [
                pl.BlockSpec((block_b, d_pad), lambda i: (i, 0)),
                # Grid-invariant weight/bias blocks: single-buffer them.
                pl.BlockSpec((L, d_pad, d_pad), lambda i: (0, 0, 0),
                             pipeline_mode=weight_mode),
                pl.BlockSpec((L, 1, d_pad), lambda i: (0, 0, 0),
                             pipeline_mode=weight_mode),
            ]
            out_specs = pl.BlockSpec((block_b, d_pad), lambda i: (i, 0))
            kernel = functools.partial(_cross_kernel_resident, num_layers=L)
            scratch = []
            dims = ("parallel",)

        return pl.pallas_call(
            kernel,
            out_shape=out_shape,
            grid_spec=pltpu.PrefetchScalarGridSpec(
                num_scalar_prefetch=0,
                grid=grid,
                in_specs=in_specs,
                out_specs=out_specs,
                scratch_shapes=scratch,
            ),
            compiler_params=pltpu.CompilerParams(
                dimension_semantics=dims,
                vmem_limit_bytes=vmem_limit,
            ),
            cost_estimate=cost,
        )(x_p, w_t_padded, b_padded)

    try:
        out = _call(pl.Buffered(1))
    except Exception:
        # Fallback if this JAX build rejects Buffered(1) as a pipeline_mode.
        out = _call(None)

    return out[:B, :d]


def cross_network_v2_ref(x, weights, biases):
    """Pure-JAX reference matching the PyTorch forward."""
    x0 = x
    for l in range(weights.shape[0]):
        xw = x @ weights[l].T + biases[l]
        x = x + x0 * xw
    return x


if __name__ == "__main__":
    B = 8            # batch
    d = 32           # num_feature
    L = 3            # num_layers

    key = jax.random.PRNGKey(0)
    kx, *kws = jax.random.split(key, 1 + 2 * L)

    x = jax.random.normal(kx, (B, d), dtype=jnp.float32)

    # Deterministic init mimicking nn.Linear defaults: U(-1/sqrt(d), 1/sqrt(d)).
    bound = 1.0 / (d ** 0.5)
    weights = jnp.stack([
        jax.random.uniform(kws[2 * i], (d, d), jnp.float32, -bound, bound)
        for i in range(L)
    ])
    biases = jnp.stack([
        jax.random.uniform(kws[2 * i + 1], (d,), jnp.float32, -bound, bound)
        for i in range(L)
    ])

    ref = cross_network_v2_ref(x, weights, biases)

    # One-time parameter prep (f32 path).
    w_f32, b_f32 = prepare_cross_params(weights, biases)

    # 1) Resident-weight kernel (default path).
    out = jax.block_until_ready(cross_network_v2(x, w_f32, b_f32))
    assert out.shape == (B, d)
    assert jnp.allclose(out, ref, atol=1e-5, rtol=1e-5), "resident path mismatch"

    # 2) Layer-streaming kernel (big-weight fallback), forced for coverage.
    out_s = jax.block_until_ready(
        cross_network_v2(x, w_f32, b_f32, force_stream_layers=True))
    assert jnp.allclose(out_s, ref, atol=1e-5, rtol=1e-5), "streamed path mismatch"

    # 3) bf16 parameter path (recommended for real sizes) -- looser tolerance
    #    vs the f32 reference by design.
    w_bf16, b_bf16 = prepare_cross_params(weights, biases, param_dtype=jnp.bfloat16)
    out_bf16 = jax.block_until_ready(cross_network_v2(x, w_bf16, b_bf16))
    assert jnp.allclose(out_bf16, ref, atol=1e-1, rtol=1e-1), "bf16 path mismatch"

    print("KERNEL_OK")
</pallas_src>

<mosaic_0001>
module attributes {stable_mosaic.version = 11 : i64} {
  func.func @_cross_kernel_resident(%arg0: i32, %arg1: memref<8x128xf32, #tpu.memory_space<vmem>>, %arg2: memref<3x128x128xf32, #tpu.memory_space<vmem>>, %arg3: memref<3x1x128xf32, #tpu.memory_space<vmem>>, %arg4: memref<8x128xf32, #tpu.memory_space<vmem>>) attributes {dimension_semantics = [#tpu.dimension_semantics<parallel>], iteration_bounds = array<i64: 1>, scalar_prefetch = 0 : i64, scratch_operands = 0 : i64, tpu.core_type = #tpu.core_type<tc>, window_params = [{transform_indices = @transform_0, window_bounds = array<i64: 8, 128>}, {pipeline_mode = #tpu.pipeline_mode<synchronous>, transform_indices = @transform_1, window_bounds = array<i64: 3, 128, 128>}, {pipeline_mode = #tpu.pipeline_mode<synchronous>, transform_indices = @transform_2, window_bounds = array<i64: 3, 1, 128>}, {transform_indices = @transform_3, window_bounds = array<i64: 8, 128>}]} {
    %c0 = arith.constant 0 : index
    %c0_0 = arith.constant 0 : index
    %0 = vector.load %arg1[%c0, %c0_0] : memref<8x128xf32, #tpu.memory_space<vmem>>, vector<8x128xf32>
    %c0_i32 = arith.constant 0 : i32
    %1 = arith.index_cast %c0_i32 : i32 to index
    %c0_1 = arith.constant 0 : index
    %c0_2 = arith.constant 0 : index
    %2 = vector.load %arg2[%1, %c0_1, %c0_2] : memref<3x128x128xf32, #tpu.memory_space<vmem>>, vector<1x128x128xf32>
    %3 = vector.shape_cast %2 : vector<1x128x128xf32> to vector<128x128xf32>
    %4 = arith.index_cast %c0_i32 : i32 to index
    %c0_3 = arith.constant 0 : index
    %c0_4 = arith.constant 0 : index
    %5 = vector.load %arg3[%4, %c0_3, %c0_4] : memref<3x1x128xf32, #tpu.memory_space<vmem>>, vector<1x1x128xf32>
    %6 = vector.shape_cast %5 : vector<1x1x128xf32> to vector<1x128xf32>
    %cst = arith.constant dense<0.000000e+00> : vector<8x128xf32>
    %7 = tpu.matmul %0, %3, %cst {dimension_numbers = #tpu.dot_dimension_numbers<[1], [0], [0], [1], [0, 0, 1, 1], [], []>} : vector<8x128xf32>, vector<128x128xf32>, vector<8x128xf32> -> vector<8x128xf32>
    %8 = vector.broadcast %6 : vector<1x128xf32> to vector<8x128xf32>
    %9 = arith.addf %7, %8 : vector<8x128xf32>
    %10 = arith.mulf %0, %9 : vector<8x128xf32>
    %11 = arith.addf %0, %10 : vector<8x128xf32>
    %c1_i32 = arith.constant 1 : i32
    %12 = arith.index_cast %c1_i32 : i32 to index
    %c0_5 = arith.constant 0 : index
    %c0_6 = arith.constant 0 : index
    %13 = vector.load %arg2[%12, %c0_5, %c0_6] : memref<3x128x128xf32, #tpu.memory_space<vmem>>, vector<1x128x128xf32>
    %14 = vector.shape_cast %13 : vector<1x128x128xf32> to vector<128x128xf32>
    %15 = arith.index_cast %c1_i32 : i32 to index
    %c0_7 = arith.constant 0 : index
    %c0_8 = arith.constant 0 : index
    %16 = vector.load %arg3[%15, %c0_7, %c0_8] : memref<3x1x128xf32, #tpu.memory_space<vmem>>, vector<1x1x128xf32>
    %17 = vector.shape_cast %16 : vector<1x1x128xf32> to vector<1x128xf32>
    %cst_9 = arith.constant dense<0.000000e+00> : vector<8x128xf32>
    %18 = tpu.matmul %11, %14, %cst_9 {dimension_numbers = #tpu.dot_dimension_numbers<[1], [0], [0], [1], [0, 0, 1, 1], [], []>} : vector<8x128xf32>, vector<128x128xf32>, vector<8x128xf32> -> vector<8x128xf32>
    %19 = vector.broadcast %17 : vector<1x128xf32> to vector<8x128xf32>
    %20 = arith.addf %18, %19 : vector<8x128xf32>
    %21 = arith.mulf %0, %20 : vector<8x128xf32>
    %22 = arith.addf %11, %21 : vector<8x128xf32>
    %c2_i32 = arith.constant 2 : i32
    %23 = arith.index_cast %c2_i32 : i32 to index
    %c0_10 = arith.constant 0 : index
    %c0_11 = arith.constant 0 : index
    %24 = vector.load %arg2[%23, %c0_10, %c0_11] : memref<3x128x128xf32, #tpu.memory_space<vmem>>, vector<1x128x128xf32>
    %25 = vector.shape_cast %24 : vector<1x128x128xf32> to vector<128x128xf32>
    %26 = arith.index_cast %c2_i32 : i32 to index
    %c0_12 = arith.constant 0 : index
    %c0_13 = arith.constant 0 : index
    %27 = vector.load %arg3[%26, %c0_12, %c0_13] : memref<3x1x128xf32, #tpu.memory_space<vmem>>, vector<1x1x128xf32>
    %28 = vector.shape_cast %27 : vector<1x1x128xf32> to vector<1x128xf32>
    %cst_14 = arith.constant dense<0.000000e+00> : vector<8x128xf32>
    %29 = tpu.matmul %22, %25, %cst_14 {dimension_numbers = #tpu.dot_dimension_numbers<[1], [0], [0], [1], [0, 0, 1, 1], [], []>} : vector<8x128xf32>, vector<128x128xf32>, vector<8x128xf32> -> vector<8x128xf32>
    %30 = vector.broadcast %28 : vector<1x128xf32> to vector<8x128xf32>
    %31 = arith.addf %29, %30 : vector<8x128xf32>
    %32 = arith.mulf %0, %31 : vector<8x128xf32>
    %33 = arith.addf %22, %32 : vector<8x128xf32>
    %c3_i32 = arith.constant 3 : i32
    %c0_15 = arith.constant 0 : index
    %c0_16 = arith.constant 0 : index
    %34 = vector.load %arg4[%c0_15, %c0_16] : memref<8x128xf32, #tpu.memory_space<vmem>>, vector<8x128xf32>
    tpu.vector_store %arg4[%c0_15, %c0_16], %33 {strides = array<i32>} : memref<8x128xf32, #tpu.memory_space<vmem>>, vector<8x128xf32>,
    return
  }
  func.func @transform_0(%arg0: i32) -> (i32, i32) {
    %c0_i32 = arith.constant 0 : i32
    %c0_i32_0 = arith.constant 0 : i32
    return %arg0, %c0_i32 : i32, i32
  }
  func.func @transform_1(%arg0: i32) -> (i32, i32, i32) {
    %c0_i32 = arith.constant 0 : i32
    %c0_i32_0 = arith.constant 0 : i32
    %c0_i32_1 = arith.constant 0 : i32
    %c0_i32_2 = arith.constant 0 : i32
    return %c0_i32, %c0_i32_0, %c0_i32_1 : i32, i32, i32
  }
  func.func @transform_2(%arg0: i32) -> (i32, i32, i32) {
    %c0_i32 = arith.constant 0 : i32
    %c0_i32_0 = arith.constant 0 : i32
    %c0_i32_1 = arith.constant 0 : i32
    %c0_i32_2 = arith.constant 0 : i32
    return %c0_i32, %c0_i32_0, %c0_i32_1 : i32, i32, i32
  }
  func.func @transform_3(%arg0: i32) -> (i32, i32) {
    %c0_i32 = arith.constant 0 : i32
    %c0_i32_0 = arith.constant 0 : i32
    return %arg0, %c0_i32 : i32, i32
  }
}

module attributes {stable_mosaic.version = 11 : i64} {
  func.func @_cross_kernel_resident(%arg0: i32, %arg1: memref<8x128xf32, #tpu.memory_space<vmem>>, %arg2: memref<3x128x128xf32, #tpu.memory_space<vmem>>, %arg3: memref<3x1x128xf32, #tpu.memory_space<vmem>>, %arg4: memref<8x128xf32, #tpu.memory_space<vmem>>) attributes {dimension_semantics = [#tpu.dimension_semantics<parallel>], iteration_bounds = array<i64: 1>, scalar_prefetch = 0 : i64, scratch_operands = 0 : i64, tpu.core_type = #tpu.core_type<tc>, window_params = [{transform_indices = @transform_0, window_bounds = array<i64: 8, 128>}, {pipeline_mode = #tpu.pipeline_mode<synchronous>, transform_indices = @transform_1, window_bounds = array<i64: 3, 128, 128>}, {pipeline_mode = #tpu.pipeline_mode<synchronous>, transform_indices = @transform_2, window_bounds = array<i64: 3, 1, 128>}, {transform_indices = @transform_3, window_bounds = array<i64: 8, 128>}]} {
    %c0 = arith.constant 0 : index
    %c0_0 = arith.constant 0 : index
    %0 = vector.load %arg1[%c0, %c0_0] : memref<8x128xf32, #tpu.memory_space<vmem>>, vector<8x128xf32>
    %c0_i32 = arith.constant 0 : i32
    %1 = arith.index_cast %c0_i32 : i32 to index
    %c0_1 = arith.constant 0 : index
    %c0_2 = arith.constant 0 : index
    %2 = vector.load %arg2[%1, %c0_1, %c0_2] : memref<3x128x128xf32, #tpu.memory_space<vmem>>, vector<1x128x128xf32>
    %3 = vector.shape_cast %2 : vector<1x128x128xf32> to vector<128x128xf32>
    %4 = arith.index_cast %c0_i32 : i32 to index
    %c0_3 = arith.constant 0 : index
    %c0_4 = arith.constant 0 : index
    %5 = vector.load %arg3[%4, %c0_3, %c0_4] : memref<3x1x128xf32, #tpu.memory_space<vmem>>, vector<1x1x128xf32>
    %6 = vector.shape_cast %5 : vector<1x1x128xf32> to vector<1x128xf32>
    %cst = arith.constant dense<0.000000e+00> : vector<8x128xf32>
    %7 = tpu.matmul %0, %3, %cst {dimension_numbers = #tpu.dot_dimension_numbers<[1], [0], [0], [1], [0, 0, 1, 1], [], []>} : vector<8x128xf32>, vector<128x128xf32>, vector<8x128xf32> -> vector<8x128xf32>
    %8 = vector.broadcast %6 : vector<1x128xf32> to vector<8x128xf32>
    %9 = arith.addf %7, %8 : vector<8x128xf32>
    %10 = arith.mulf %0, %9 : vector<8x128xf32>
    %11 = arith.addf %0, %10 : vector<8x128xf32>
    %c1_i32 = arith.constant 1 : i32
    %12 = arith.index_cast %c1_i32 : i32 to index
    %c0_5 = arith.constant 0 : index
    %c0_6 = arith.constant 0 : index
    %13 = vector.load %arg2[%12, %c0_5, %c0_6] : memref<3x128x128xf32, #tpu.memory_space<vmem>>, vector<1x128x128xf32>
    %14 = vector.shape_cast %13 : vector<1x128x128xf32> to vector<128x128xf32>
    %15 = arith.index_cast %c1_i32 : i32 to index
    %c0_7 = arith.constant 0 : index
    %c0_8 = arith.constant 0 : index
    %16 = vector.load %arg3[%15, %c0_7, %c0_8] : memref<3x1x128xf32, #tpu.memory_space<vmem>>, vector<1x1x128xf32>
    %17 = vector.shape_cast %16 : vector<1x1x128xf32> to vector<1x128xf32>
    %cst_9 = arith.constant dense<0.000000e+00> : vector<8x128xf32>
    %18 = tpu.matmul %11, %14, %cst_9 {dimension_numbers = #tpu.dot_dimension_numbers<[1], [0], [0], [1], [0, 0, 1, 1], [], []>} : vector<8x128xf32>, vector<128x128xf32>, vector<8x128xf32> -> vector<8x128xf32>
    %19 = vector.broadcast %17 : vector<1x128xf32> to vector<8x128xf32>
    %20 = arith.addf %18, %19 : vector<8x128xf32>
    %21 = arith.mulf %0, %20 : vector<8x128xf32>
    %22 = arith.addf %11, %21 : vector<8x128xf32>
    %c2_i32 = arith.constant 2 : i32
    %23 = arith.index_cast %c2_i32 : i32 to index
    %c0_10 = arith.constant 0 : index
    %c0_11 = arith.constant 0 : index
    %24 = vector.load %arg2[%23, %c0_10, %c0_11] : memref<3x128x128xf32, #tpu.memory_space<vmem>>, vector<1x128x128xf32>
    %25 = vector.shape_cast %24 : vector<1x128x128xf32> to vector<128x128xf32>
    %26 = arith.index_cast %c2_i32 : i32 to index
    %c0_12 = arith.constant 0 : index
    %c0_13 = arith.constant 0 : index
    %27 = vector.load %arg3[%26, %c0_12, %c0_13] : memref<3x1x128xf32, #tpu.memory_space<vmem>>, vector<1x1x128xf32>
    %28 = vector.shape_cast %27 : vector<1x1x128xf32> to vector<1x128xf32>
    %cst_14 = arith.constant dense<0.000000e+00> : vector<8x128xf32>
    %29 = tpu.matmul %22, %25, %cst_14 {dimension_numbers = #tpu.dot_dimension_numbers<[1], [0], [0], [1], [0, 0, 1, 1], [], []>} : vector<8x128xf32>, vector<128x128xf32>, vector<8x128xf32> -> vector<8x128xf32>
    %30 = vector.broadcast %28 : vector<1x128xf32> to vector<8x128xf32>
    %31 = arith.addf %29, %30 : vector<8x128xf32>
    %32 = arith.mulf %0, %31 : vector<8x128xf32>
    %33 = arith.addf %22, %32 : vector<8x128xf32>
    %c3_i32 = arith.constant 3 : i32
    %c0_15 = arith.constant 0 : index
    %c0_16 = arith.constant 0 : index
    %34 = vector.load %arg4[%c0_15, %c0_16] : memref<8x128xf32, #tpu.memory_space<vmem>>, vector<8x128xf32>
    tpu.vector_store %arg4[%c0_15, %c0_16], %33 {strides = array<i32>} : memref<8x128xf32, #tpu.memory_space<vmem>>, vector<8x128xf32>,
    return
  }
  func.func @transform_0(%arg0: i32) -> (i32, i32) {
    %c0_i32 = arith.constant 0 : i32
    %c0_i32_0 = arith.constant 0 : i32
    return %arg0, %c0_i32 : i32, i32
  }
  func.func @transform_1(%arg0: i32) -> (i32, i32, i32) {
    %c0_i32 = arith.constant 0 : i32
    %c0_i32_0 = arith.constant 0 : i32
    %c0_i32_1 = arith.constant 0 : i32
    %c0_i32_2 = arith.constant 0 : i32
    return %c0_i32, %c0_i32_0, %c0_i32_1 : i32, i32, i32
  }
  func.func @transform_2(%arg0: i32) -> (i32, i32, i32) {
    %c0_i32 = arith.constant 0 : i32
    %c0_i32_0 = arith.constant 0 : i32
    %c0_i32_1 = arith.constant 0 : i32
    %c0_i32_2 = arith.constant 0 : i32
    return %c0_i32, %c0_i32_0, %c0_i32_1 : i32, i32, i32
  }
  func.func @transform_3(%arg0: i32) -> (i32, i32) {
    %c0_i32 = arith.constant 0 : i32
    %c0_i32_0 = arith.constant 0 : i32
    return %arg0, %c0_i32 : i32, i32
  }
}

</mosaic_0001>

<llo_original>
// kernel: tpu_custom_call.1
$region0: #{tpu_custom_call.1}
  #allocation0 [shape = 'u32[]', space=smem, size = 0x4, offset = 0x4, fixed_abs, tag = 'smem constant byte address 0x4 - core index']
  #allocation1 [shape = 'u32[144,128]{1,0:T(1,128)}', space=vmem, size = 0x12000, scoped, tag = 'internal scratch']
  %s0 = inlined_call_operand.hbm [shape: f32[8,128], index: 0, kind: input, shape index: {}]
  %s1 = inlined_call_operand.hbm [shape: f32[3,128,128], index: 1, kind: input, shape index: {}]
  %s2 = inlined_call_operand.vmem [shape: f32[3,1,128], index: 2, kind: input, shape index: {}]
  %s3 = inlined_call_operand.hbm [shape: f32[8,128], index: 3, kind: output, shape index: {}]
  %s4 = sld [smem:[#allocation0]]
  $region30: #{tpu_custom_call.1} parent=0
    _
  %s6 = ssub.s32 1, %s4
  %s7 = scalar_select 0, %s6, %s4
  $region1: #{tpu_custom_call.1} parent=0
    #allocation2 [shape = 'u8[4096]{0}', space=vmem, size = 0x1000, scoped, tag = 'input window, operand 0, single buffered']
    #allocation3 [shape = 's32[1]{0}', space=sflag, size = 0x4, scoped, tag = 'scoped memory for tpu_custom_call.1']
    #allocation4 [shape = 's32[1]{0}', space=sflag, size = 0x4, scoped, tag = 'scoped memory for tpu_custom_call.1']
    #allocation5 [shape = 'u8[196608]{0}', space=vmem, size = 0x30000, scoped, tag = 'input window, operand 1, single buffered']
    #allocation6 [shape = 's32[1]{0}', space=sflag, size = 0x4, scoped, tag = 'scoped memory for tpu_custom_call.1']
    #allocation7 [shape = 'u8[4096]{0}', space=vmem, size = 0x1000, scoped, tag = 'output window, operand 0, single buffered']
    %8 = vsyncpa [#allocation3], 0
    %9 = vsyncpa [#allocation6], 0
    %10 = vsyncpa [#allocation4], 0
    // Predicated region
    $region2: #{tpu_custom_call.1} parent=1 // pred_check
      _
    $region3: #{tpu_custom_call.1} parent=1 // pred_check_branch
      %12 = sbr.rel (0) target = $region5
    $region4: #{tpu_custom_call.1} parent=1 // pred_region
      %s14 = ssub.s32 128, 128
      %15 = vsyncadd [#allocation3], %s14
      %s17 = sshll.u32 [#allocation2], 4
      %s18 = int_to_ptr.vmem [resolvable:$true] %s17
      %20 = dma.hbm_to_vmem [thread:$0]  %s0, 128, %s18, [#allocation3]
    $region5: #{tpu_custom_call.1} parent=1 // pred_fallthru
      _
    // Predicated region
    $region6: #{tpu_custom_call.1} parent=1 // pred_check
      _
    $region7: #{tpu_custom_call.1} parent=1 // pred_check_branch
      %22 = sbr.rel (0) target = $region9
    $region8: #{tpu_custom_call.1} parent=1 // pred_region
      %s24 = ssub.s32 6144, 6144
      %25 = vsyncadd [#allocation6], %s24
      %s26 = sshll.u32 [#allocation5], 4
      %s27 = int_to_ptr.vmem [resolvable:$true] %s26
      %32 = dma.hbm_to_vmem [thread:$0]  %s1, 6144, %s27, [#allocation6], 128, 128, 8
    $region9: #{tpu_custom_call.1} parent=1 // pred_fallthru
      _
    // Predicated region
    $region10: #{tpu_custom_call.1} parent=1 // pred_check
      _
    $region11: #{tpu_custom_call.1} parent=1 // pred_check_branch
      %34 = sbr.rel (0) target = $region13
    $region12: #{tpu_custom_call.1} parent=1 // pred_region
      _
    $region13: #{tpu_custom_call.1} parent=1 // pred_fallthru
      _
    // Predicated region
    $region14: #{tpu_custom_call.1} parent=1 // pred_check
      _
    $region15: #{tpu_custom_call.1} parent=1 // pred_check_branch
      %36 = sbr.rel (0) target = $region17
    $region16: #{tpu_custom_call.1} parent=1 // pred_region
      %37 = dma.done [#allocation3], 128
    $region17: #{tpu_custom_call.1} parent=1 // pred_fallthru
      _
    // Predicated region
    $region18: #{tpu_custom_call.1} parent=1 // pred_check
      _
    $region19: #{tpu_custom_call.1} parent=1 // pred_check_branch
      %39 = sbr.rel (0) target = $region21
    $region20: #{tpu_custom_call.1} parent=1 // pred_region
      %40 = dma.done [#allocation6], 6144
    $region21: #{tpu_custom_call.1} parent=1 // pred_fallthru
      _
    %v41 = vld [vmem:[#allocation2] sm:$0xff]
    %v42 = vld [vmem:[#allocation5] sm:$0xff]
    %v43 = vld [vmem:[#allocation5 + $0x8] sm:$0xff]
    %v44 = vld [vmem:[#allocation5 + $0x10] sm:$0xff]
    %v45 = vld [vmem:[#allocation5 + $0x18] sm:$0xff]
    %v46 = vld [vmem:[#allocation5 + $0x20] sm:$0xff]
    %v47 = vld [vmem:[#allocation5 + $0x28] sm:$0xff]
    %v48 = vld [vmem:[#allocation5 + $0x30] sm:$0xff]
    %v49 = vld [vmem:[#allocation5 + $0x38] sm:$0xff]
    %v50 = vld [vmem:[#allocation5 + $0x40] sm:$0xff]
    %v51 = vld [vmem:[#allocation5 + $0x48] sm:$0xff]
    %v52 = vld [vmem:[#allocation5 + $0x50] sm:$0xff]
    %v53 = vld [vmem:[#allocation5 + $0x58] sm:$0xff]
    %v54 = vld [vmem:[#allocation5 + $0x60] sm:$0xff]
    %v55 = vld [vmem:[#allocation5 + $0x68] sm:$0xff]
    %v56 = vld [vmem:[#allocation5 + $0x70] sm:$0xff]
    %v57 = vld [vmem:[#allocation5 + $0x78] sm:$0xff]
    %v58 = vld [vmem:[%s2] sm:$0x1]
    %v60 = vlaneseq
    %v61 = vshrl.u32 %v60, 7
    %v62 = vsub.s32 0, %v61
    %v63 = vrot.slane %v58, %v62
    %65 = vmatprep.subr.mxu0 0.0
    %66 = vmatpush1.msra.mxu0 %v42
    %67 = vmatprep.subr.mxu0 0.0
    %68 = vmatpush1.msra.mxu0 %v43
    %69 = vmatprep.subr.mxu0 0.0
    %70 = vmatpush1.msra.mxu0 %v44
    %71 = vmatprep.subr.mxu0 0.0
    %72 = vmatpush1.msra.mxu0 %v45
    %73 = vmatprep.subr.mxu0 0.0
    %74 = vmatpush1.msra.mxu0 %v46
    %75 = vmatprep.subr.mxu0 0.0
    %76 = vmatpush1.msra.mxu0 %v47
    %77 = vmatprep.subr.mxu0 0.0
    %78 = vmatpush1.msra.mxu0 %v48
    %79 = vmatprep.subr.mxu0 0.0
    %80 = vmatpush1.msra.mxu0 %v49
    %81 = vmatprep.subr.mxu0 0.0
    %82 = vmatpush1.msra.mxu0 %v50
    %83 = vmatprep.subr.mxu0 0.0
    %84 = vmatpush1.msra.mxu0 %v51
    %85 = vmatprep.subr.mxu0 0.0
    %86 = vmatpush1.msra.mxu0 %v52
    %87 = vmatprep.subr.mxu0 0.0
    %88 = vmatpush1.msra.mxu0 %v53
    %89 = vmatprep.subr.mxu0 0.0
    %90 = vmatpush1.msra.mxu0 %v54
    %91 = vmatprep.subr.mxu0 0.0
    %92 = vmatpush1.msra.mxu0 %v55
    %93 = vmatprep.subr.mxu0 0.0
    %94 = vmatpush1.msra.mxu0 %v56
    %95 = vmatprep.subr.mxu0 0.0
    %96 = vmatpush1.msra.mxu0 %v57
    %97 = vmatprep.subr.mxu0 0.0
    %98 = vmatpush1.msra.mxu0 0.0
    %99 = vmatprep.subr.mxu0 0.0
    %100 = vmatpush1.msra.mxu0 0.0
    %101 = vmatprep.subr.mxu0 0.0
    %102 = vmatpush1.msra.mxu0 0.0
    %103 = vmatprep.subr.mxu0 0.0
    %104 = vmatpush1.msra.mxu0 0.0
    %105 = vmatprep.subr.mxu0 0.0
    %106 = vmatpush1.msra.mxu0 0.0
    %107 = vmatprep.subr.mxu0 0.0
    %108 = vmatpush1.msra.mxu0 0.0
    %109 = vmatprep.subr.mxu0 0.0
    %110 = vmatpush1.msra.mxu0 0.0
    %111 = vmatprep.subr.mxu0 0.0
    %112 = vmatpush1.msra.mxu0 0.0
    %113 = vmatprep.subr.mxu0 0.0
    %114 = vmatpush1.msra.mxu0 0.0
    %115 = vmatprep.subr.mxu0 0.0
    %116 = vmatpush1.msra.mxu0 0.0
    %117 = vmatprep.subr.mxu0 0.0
    %118 = vmatpush1.msra.mxu0 0.0
    %119 = vmatprep.subr.mxu0 0.0
    %120 = vmatpush1.msra.mxu0 0.0
    %121 = vmatprep.subr.mxu0 0.0
    %122 = vmatpush1.msra.mxu0 0.0
    %123 = vmatprep.subr.mxu0 0.0
    %124 = vmatpush1.msra.mxu0 0.0
    %125 = vmatprep.subr.mxu0 0.0
    %126 = vmatpush1.msra.mxu0 0.0
    %127 = vmatprep.subr.mxu0 0.0
    %128 = vmatpush1.msra.mxu0 0.0
    %129 = vmatprep.mubr.f32.mxu0 0.0
    %130 = vmatmul.mubr.f32.gmra.mrb[0].mxu0 %v41
    %v131 = vpop.f32.mrb[0].mxu0
    %v132 = vadd.f32 %v63, %v131
    %v133 = vpop.f32.mrb[0].mxu0
    %134 = vdwg.mxu0
    %v135 = vmul.f32 %v41, %v132
    %v136 = vadd.f32 %v41, %v135
    %s137 = scalar_lea.vmem [#allocation5], 128
    %v138 = vld [vmem:[%s137] sm:$0xff]
    %v139 = vld [vmem:[%s137 + $0x8] sm:$0xff]
    %v140 = vld [vmem:[%s137 + $0x10] sm:$0xff]
    %v141 = vld [vmem:[%s137 + $0x18] sm:$0xff]
    %v142 = vld [vmem:[%s137 + $0x20] sm:$0xff]
    %v143 = vld [vmem:[%s137 + $0x28] sm:$0xff]
    %v144 = vld [vmem:[%s137 + $0x30] sm:$0xff]
    %v145 = vld [vmem:[%s137 + $0x38] sm:$0xff]
    %v146 = vld [vmem:[%s137 + $0x40] sm:$0xff]
    %v147 = vld [vmem:[%s137 + $0x48] sm:$0xff]
    %v148 = vld [vmem:[%s137 + $0x50] sm:$0xff]
    %v149 = vld [vmem:[%s137 + $0x58] sm:$0xff]
    %v150 = vld [vmem:[%s137 + $0x60] sm:$0xff]
    %v151 = vld [vmem:[%s137 + $0x68] sm:$0xff]
    %v152 = vld [vmem:[%s137 + $0x70] sm:$0xff]
    %v153 = vld [vmem:[%s137 + $0x78] sm:$0xff]
    %s154 = scalar_lea.vmem %s2, 1
    %v155 = vld [vmem:[%s154] sm:$0x1]
    %v157 = vlaneseq
    %v158 = vshrl.u32 %v157, 7
    %v159 = vsub.s32 0, %v158
    %v160 = vrot.slane %v155, %v159
    %162 = vmatprep.subr.mxu0 0.0
    %163 = vmatpush1.msra.mxu0 %v138
    %164 = vmatprep.subr.mxu0 0.0
    %165 = vmatpush1.msra.mxu0 %v139
    %166 = vmatprep.subr.mxu0 0.0
    %167 = vmatpush1.msra.mxu0 %v140
    %168 = vmatprep.subr.mxu0 0.0
    %169 = vmatpush1.msra.mxu0 %v141
    %170 = vmatprep.subr.mxu0 0.0
    %171 = vmatpush1.msra.mxu0 %v142
    %172 = vmatprep.subr.mxu0 0.0
    %173 = vmatpush1.msra.mxu0 %v143
    %174 = vmatprep.subr.mxu0 0.0
    %175 = vmatpush1.msra.mxu0 %v144
    %176 = vmatprep.subr.mxu0 0.0
    %177 = vmatpush1.msra.mxu0 %v145
    %178 = vmatprep.subr.mxu0 0.0
    %179 = vmatpush1.msra.mxu0 %v146
    %180 = vmatprep.subr.mxu0 0.0
    %181 = vmatpush1.msra.mxu0 %v147
    %182 = vmatprep.subr.mxu0 0.0
    %183 = vmatpush1.msra.mxu0 %v148
    %184 = vmatprep.subr.mxu0 0.0
    %185 = vmatpush1.msra.mxu0 %v149
    %186 = vmatprep.subr.mxu0 0.0
    %187 = vmatpush1.msra.mxu0 %v150
    %188 = vmatprep.subr.mxu0 0.0
    %189 = vmatpush1.msra.mxu0 %v151
    %190 = vmatprep.subr.mxu0 0.0
    %191 = vmatpush1.msra.mxu0 %v152
    %192 = vmatprep.subr.mxu0 0.0
    %193 = vmatpush1.msra.mxu0 %v153
    %194 = vmatprep.subr.mxu0 0.0
    %195 = vmatpush1.msra.mxu0 0.0
    %196 = vmatprep.subr.mxu0 0.0
    %197 = vmatpush1.msra.mxu0 0.0
    %198 = vmatprep.subr.mxu0 0.0
    %199 = vmatpush1.msra.mxu0 0.0
    %200 = vmatprep.subr.mxu0 0.0
    %201 = vmatpush1.msra.mxu0 0.0
    %202 = vmatprep.subr.mxu0 0.0
    %203 = vmatpush1.msra.mxu0 0.0
    %204 = vmatprep.subr.mxu0 0.0
    %205 = vmatpush1.msra.mxu0 0.0
    %206 = vmatprep.subr.mxu0 0.0
    %207 = vmatpush1.msra.mxu0 0.0
    %208 = vmatprep.subr.mxu0 0.0
    %209 = vmatpush1.msra.mxu0 0.0
    %210 = vmatprep.subr.mxu0 0.0
    %211 = vmatpush1.msra.mxu0 0.0
    %212 = vmatprep.subr.mxu0 0.0
    %213 = vmatpush1.msra.mxu0 0.0
    %214 = vmatprep.subr.mxu0 0.0
    %215 = vmatpush1.msra.mxu0 0.0
    %216 = vmatprep.subr.mxu0 0.0
    %217 = vmatpush1.msra.mxu0 0.0
    %218 = vmatprep.subr.mxu0 0.0
    %219 = vmatpush1.msra.mxu0 0.0
    %220 = vmatprep.subr.mxu0 0.0
    %221 = vmatpush1.msra.mxu0 0.0
    %222 = vmatprep.subr.mxu0 0.0
    %223 = vmatpush1.msra.mxu0 0.0
    %224 = vmatprep.subr.mxu0 0.0
    %225 = vmatpush1.msra.mxu0 0.0
    %226 = vmatprep.mubr.f32.mxu0 0.0
    %227 = vmatmul.mubr.f32.gmra.mrb[0].mxu0 %v136
    %v228 = vpop.f32.mrb[0].mxu0
    %v229 = vadd.f32 %v160, %v228
    %v230 = vpop.f32.mrb[0].mxu0
    %231 = vdwg.mxu0
    %v232 = vmul.f32 %v41, %v229
    %v233 = vadd.f32 %v136, %v232
    %s234 = scalar_lea.vmem [#allocation5], 256
    %v235 = vld [vmem:[%s234] sm:$0xff]
    %v236 = vld [vmem:[%s234 + $0x8] sm:$0xff]
    %v237 = vld [vmem:[%s234 + $0x10] sm:$0xff]
    %v238 = vld [vmem:[%s234 + $0x18] sm:$0xff]
    %v239 = vld [vmem:[%s234 + $0x20] sm:$0xff]
    %v240 = vld [vmem:[%s234 + $0x28] sm:$0xff]
    %v241 = vld [vmem:[%s234 + $0x30] sm:$0xff]
    %v242 = vld [vmem:[%s234 + $0x38] sm:$0xff]
    %v243 = vld [vmem:[%s234 + $0x40] sm:$0xff]
    %v244 = vld [vmem:[%s234 + $0x48] sm:$0xff]
    %v245 = vld [vmem:[%s234 + $0x50] sm:$0xff]
    %v246 = vld [vmem:[%s234 + $0x58] sm:$0xff]
    %v247 = vld [vmem:[%s234 + $0x60] sm:$0xff]
    %v248 = vld [vmem:[%s234 + $0x68] sm:$0xff]
    %v249 = vld [vmem:[%s234 + $0x70] sm:$0xff]
    %v250 = vld [vmem:[%s234 + $0x78] sm:$0xff]
    %s251 = scalar_lea.vmem %s2, 2
    %v252 = vld [vmem:[%s251] sm:$0x1]
    %v254 = vlaneseq
    %v255 = vshrl.u32 %v254, 7
    %v256 = vsub.s32 0, %v255
    %v257 = vrot.slane %v252, %v256
    %259 = vmatprep.subr.mxu0 0.0
    %260 = vmatpush1.msra.mxu0 %v235
    %261 = vmatprep.subr.mxu0 0.0
    %262 = vmatpush1.msra.mxu0 %v236
    %263 = vmatprep.subr.mxu0 0.0
    %264 = vmatpush1.msra.mxu0 %v237
    %265 = vmatprep.subr.mxu0 0.0
    %266 = vmatpush1.msra.mxu0 %v238
    %267 = vmatprep.subr.mxu0 0.0
    %268 = vmatpush1.msra.mxu0 %v239
    %269 = vmatprep.subr.mxu0 0.0
    %270 = vmatpush1.msra.mxu0 %v240
    %271 = vmatprep.subr.mxu0 0.0
    %272 = vmatpush1.msra.mxu0 %v241
    %273 = vmatprep.subr.mxu0 0.0
    %274 = vmatpush1.msra.mxu0 %v242
    %275 = vmatprep.subr.mxu0 0.0
    %276 = vmatpush1.msra.mxu0 %v243
    %277 = vmatprep.subr.mxu0 0.0
    %278 = vmatpush1.msra.mxu0 %v244
    %279 = vmatprep.subr.mxu0 0.0
    %280 = vmatpush1.msra.mxu0 %v245
    %281 = vmatprep.subr.mxu0 0.0
    %282 = vmatpush1.msra.mxu0 %v246
    %283 = vmatprep.subr.mxu0 0.0
    %284 = vmatpush1.msra.mxu0 %v247
    %285 = vmatprep.subr.mxu0 0.0
    %286 = vmatpush1.msra.mxu0 %v248
    %287 = vmatprep.subr.mxu0 0.0
    %288 = vmatpush1.msra.mxu0 %v249
    %289 = vmatprep.subr.mxu0 0.0
    %290 = vmatpush1.msra.mxu0 %v250
    %291 = vmatprep.subr.mxu0 0.0
    %292 = vmatpush1.msra.mxu0 0.0
    %293 = vmatprep.subr.mxu0 0.0
    %294 = vmatpush1.msra.mxu0 0.0
    %295 = vmatprep.subr.mxu0 0.0
    %296 = vmatpush1.msra.mxu0 0.0
    %297 = vmatprep.subr.mxu0 0.0
    %298 = vmatpush1.msra.mxu0 0.0
    %299 = vmatprep.subr.mxu0 0.0
    %300 = vmatpush1.msra.mxu0 0.0
    %301 = vmatprep.subr.mxu0 0.0
    %302 = vmatpush1.msra.mxu0 0.0
    %303 = vmatprep.subr.mxu0 0.0
    %304 = vmatpush1.msra.mxu0 0.0
    %305 = vmatprep.subr.mxu0 0.0
    %306 = vmatpush1.msra.mxu0 0.0
    %307 = vmatprep.subr.mxu0 0.0
    %308 = vmatpush1.msra.mxu0 0.0
    %309 = vmatprep.subr.mxu0 0.0
    %310 = vmatpush1.msra.mxu0 0.0
    %311 = vmatprep.subr.mxu0 0.0
    %312 = vmatpush1.msra.mxu0 0.0
    %313 = vmatprep.subr.mxu0 0.0
    %314 = vmatpush1.msra.mxu0 0.0
    %315 = vmatprep.subr.mxu0 0.0
    %316 = vmatpush1.msra.mxu0 0.0
    %317 = vmatprep.subr.mxu0 0.0
    %318 = vmatpush1.msra.mxu0 0.0
    %319 = vmatprep.subr.mxu0 0.0
    %320 = vmatpush1.msra.mxu0 0.0
    %321 = vmatprep.subr.mxu0 0.0
    %322 = vmatpush1.msra.mxu0 0.0
    %323 = vmatprep.mubr.f32.mxu0 0.0
    %324 = vmatmul.mubr.f32.gmra.mrb[0].mxu0 %v233
    %v325 = vpop.f32.mrb[0].mxu0
    %v326 = vadd.f32 %v257, %v325
    %v327 = vpop.f32.mrb[0].mxu0
    %328 = vdwg.mxu0
    %v329 = vmul.f32 %v41, %v326
    %v330 = vadd.f32 %v233, %v329
    %331 = vst [vmem:[#allocation7] sm:$0xff] %v330
    // Predicated region
    $region22: #{tpu_custom_call.1} parent=1 // pred_check
      _
    $region23: #{tpu_custom_call.1} parent=1 // pred_check_branch
      %333 = sbr.rel (0) target = $region25
    $region24: #{tpu_custom_call.1} parent=1 // pred_region
      %s335 = ssub.s32 128, 128
      %336 = vsyncadd [#allocation4], %s335
      %s338 = sshll.u32 [#allocation7], 4
      %s339 = int_to_ptr.vmem [resolvable:$true] %s338
      %341 = dma.vmem_to_hbm [thread:$0]  %s339, 128, %s3, [#allocation4]
    $region25: #{tpu_custom_call.1} parent=1 // pred_fallthru
      _
    // Predicated region
    $region26: #{tpu_custom_call.1} parent=1 // pred_check
      _
    $region27: #{tpu_custom_call.1} parent=1 // pred_check_branch
      %343 = sbr.rel (0) target = $region29
    $region28: #{tpu_custom_call.1} parent=1 // pred_region
      %344 = dma.done [#allocation4], 128
    $region29: #{tpu_custom_call.1} parent=1 // pred_fallthru
      _
    %345 = vsyncpa [#allocation3], 1
    %346 = vsyncpa [#allocation6], 1
    %347 = vsyncpa [#allocation4], 1

// kernel: tpu_custom_call.1
$region0: #{tpu_custom_call.1}
  #allocation0 [shape = 'u32[]', space=smem, size = 0x4, offset = 0x4, fixed_abs, tag = 'smem constant byte address 0x4 - core index']
  #allocation1 [shape = 'u32[144,128]{1,0:T(1,128)}', space=vmem, size = 0x12000, scoped, tag = 'internal scratch']
  %s0 = inlined_call_operand.hbm [shape: f32[8,128], index: 0, kind: input, shape index: {}]
  %s1 = inlined_call_operand.hbm [shape: f32[3,128,128], index: 1, kind: input, shape index: {}]
  %s2 = inlined_call_operand.vmem [shape: f32[3,1,128], index: 2, kind: input, shape index: {}]
  %s3 = inlined_call_operand.hbm [shape: f32[8,128], index: 3, kind: output, shape index: {}]
  %s4 = sld [smem:[#allocation0]]
  $region30: #{tpu_custom_call.1} parent=0
    _
  %s6 = ssub.s32 1, %s4
  %s7 = scalar_select 0, %s6, %s4
  $region1: #{tpu_custom_call.1} parent=0
    #allocation2 [shape = 'u8[4096]{0}', space=vmem, size = 0x1000, scoped, tag = 'input window, operand 0, single buffered']
    #allocation3 [shape = 's32[1]{0}', space=sflag, size = 0x4, scoped, tag = 'scoped memory for tpu_custom_call.1']
    #allocation4 [shape = 's32[1]{0}', space=sflag, size = 0x4, scoped, tag = 'scoped memory for tpu_custom_call.1']
    #allocation5 [shape = 'u8[196608]{0}', space=vmem, size = 0x30000, scoped, tag = 'input window, operand 1, single buffered']
    #allocation6 [shape = 's32[1]{0}', space=sflag, size = 0x4, scoped, tag = 'scoped memory for tpu_custom_call.1']
    #allocation7 [shape = 'u8[4096]{0}', space=vmem, size = 0x1000, scoped, tag = 'output window, operand 0, single buffered']
    %8 = vsyncpa [#allocation3], 0
    %9 = vsyncpa [#allocation6], 0
    %10 = vsyncpa [#allocation4], 0
    // Predicated region
    $region2: #{tpu_custom_call.1} parent=1 // pred_check
      _
    $region3: #{tpu_custom_call.1} parent=1 // pred_check_branch
      %12 = sbr.rel (0) target = $region5
    $region4: #{tpu_custom_call.1} parent=1 // pred_region
      %s14 = ssub.s32 128, 128
      %15 = vsyncadd [#allocation3], %s14
      %s17 = sshll.u32 [#allocation2], 4
      %s18 = int_to_ptr.vmem [resolvable:$true] %s17
      %20 = dma.hbm_to_vmem [thread:$0]  %s0, 128, %s18, [#allocation3]
    $region5: #{tpu_custom_call.1} parent=1 // pred_fallthru
      _
    // Predicated region
    $region6: #{tpu_custom_call.1} parent=1 // pred_check
      _
    $region7: #{tpu_custom_call.1} parent=1 // pred_check_branch
      %22 = sbr.rel (0) target = $region9
    $region8: #{tpu_custom_call.1} parent=1 // pred_region
      %s24 = ssub.s32 6144, 6144
      %25 = vsyncadd [#allocation6], %s24
      %s26 = sshll.u32 [#allocation5], 4
      %s27 = int_to_ptr.vmem [resolvable:$true] %s26
      %32 = dma.hbm_to_vmem [thread:$0]  %s1, 6144, %s27, [#allocation6], 128, 128, 8
    $region9: #{tpu_custom_call.1} parent=1 // pred_fallthru
      _
    // Predicated region
    $region10: #{tpu_custom_call.1} parent=1 // pred_check
      _
    $region11: #{tpu_custom_call.1} parent=1 // pred_check_branch
      %34 = sbr.rel (0) target = $region13
    $region12: #{tpu_custom_call.1} parent=1 // pred_region
      _
    $region13: #{tpu_custom_call.1} parent=1 // pred_fallthru
      _
    // Predicated region
    $region14: #{tpu_custom_call.1} parent=1 // pred_check
      _
    $region15: #{tpu_custom_call.1} parent=1 // pred_check_branch
      %36 = sbr.rel (0) target = $region17
    $region16: #{tpu_custom_call.1} parent=1 // pred_region
      %37 = dma.done [#allocation3], 128
    $region17: #{tpu_custom_call.1} parent=1 // pred_fallthru
      _
    // Predicated region
    $region18: #{tpu_custom_call.1} parent=1 // pred_check
      _
    $region19: #{tpu_custom_call.1} parent=1 // pred_check_branch
      %39 = sbr.rel (0) target = $region21
    $region20: #{tpu_custom_call.1} parent=1 // pred_region
      %40 = dma.done [#allocation6], 6144
    $region21: #{tpu_custom_call.1} parent=1 // pred_fallthru
      _
    %v41 = vld [vmem:[#allocation2] sm:$0xff]
    %v42 = vld [vmem:[#allocation5] sm:$0xff]
    %v43 = vld [vmem:[#allocation5 + $0x8] sm:$0xff]
    %v44 = vld [vmem:[#allocation5 + $0x10] sm:$0xff]
    %v45 = vld [vmem:[#allocation5 + $0x18] sm:$0xff]
    %v46 = vld [vmem:[#allocation5 + $0x20] sm:$0xff]
    %v47 = vld [vmem:[#allocation5 + $0x28] sm:$0xff]
    %v48 = vld [vmem:[#allocation5 + $0x30] sm:$0xff]
    %v49 = vld [vmem:[#allocation5 + $0x38] sm:$0xff]
    %v50 = vld [vmem:[#allocation5 + $0x40] sm:$0xff]
    %v51 = vld [vmem:[#allocation5 + $0x48] sm:$0xff]
    %v52 = vld [vmem:[#allocation5 + $0x50] sm:$0xff]
    %v53 = vld [vmem:[#allocation5 + $0x58] sm:$0xff]
    %v54 = vld [vmem:[#allocation5 + $0x60] sm:$0xff]
    %v55 = vld [vmem:[#allocation5 + $0x68] sm:$0xff]
    %v56 = vld [vmem:[#allocation5 + $0x70] sm:$0xff]
    %v57 = vld [vmem:[#allocation5 + $0x78] sm:$0xff]
    %v58 = vld [vmem:[%s2] sm:$0x1]
    %v60 = vlaneseq
    %v61 = vshrl.u32 %v60, 7
    %v62 = vsub.s32 0, %v61
    %v63 = vrot.slane %v58, %v62
    %65 = vmatprep.subr.mxu0 0.0
    %66 = vmatpush1.msra.mxu0 %v42
    %67 = vmatprep.subr.mxu0 0.0
    %68 = vmatpush1.msra.mxu0 %v43
    %69 = vmatprep.subr.mxu0 0.0
    %70 = vmatpush1.msra.mxu0 %v44
    %71 = vmatprep.subr.mxu0 0.0
    %72 = vmatpush1.msra.mxu0 %v45
    %73 = vmatprep.subr.mxu0 0.0
    %74 = vmatpush1.msra.mxu0 %v46
    %75 = vmatprep.subr.mxu0 0.0
    %76 = vmatpush1.msra.mxu0 %v47
    %77 = vmatprep.subr.mxu0 0.0
    %78 = vmatpush1.msra.mxu0 %v48
    %79 = vmatprep.subr.mxu0 0.0
    %80 = vmatpush1.msra.mxu0 %v49
    %81 = vmatprep.subr.mxu0 0.0
    %82 = vmatpush1.msra.mxu0 %v50
    %83 = vmatprep.subr.mxu0 0.0
    %84 = vmatpush1.msra.mxu0 %v51
    %85 = vmatprep.subr.mxu0 0.0
    %86 = vmatpush1.msra.mxu0 %v52
    %87 = vmatprep.subr.mxu0 0.0
    %88 = vmatpush1.msra.mxu0 %v53
    %89 = vmatprep.subr.mxu0 0.0
    %90 = vmatpush1.msra.mxu0 %v54
    %91 = vmatprep.subr.mxu0 0.0
    %92 = vmatpush1.msra.mxu0 %v55
    %93 = vmatprep.subr.mxu0 0.0
    %94 = vmatpush1.msra.mxu0 %v56
    %95 = vmatprep.subr.mxu0 0.0
    %96 = vmatpush1.msra.mxu0 %v57
    %97 = vmatprep.subr.mxu0 0.0
    %98 = vmatpush1.msra.mxu0 0.0
    %99 = vmatprep.subr.mxu0 0.0
    %100 = vmatpush1.msra.mxu0 0.0
    %101 = vmatprep.subr.mxu0 0.0
    %102 = vmatpush1.msra.mxu0 0.0
    %103 = vmatprep.subr.mxu0 0.0
    %104 = vmatpush1.msra.mxu0 0.0
    %105 = vmatprep.subr.mxu0 0.0
    %106 = vmatpush1.msra.mxu0 0.0
    %107 = vmatprep.subr.mxu0 0.0
    %108 = vmatpush1.msra.mxu0 0.0
    %109 = vmatprep.subr.mxu0 0.0
    %110 = vmatpush1.msra.mxu0 0.0
    %111 = vmatprep.subr.mxu0 0.0
    %112 = vmatpush1.msra.mxu0 0.0
    %113 = vmatprep.subr.mxu0 0.0
    %114 = vmatpush1.msra.mxu0 0.0
    %115 = vmatprep.subr.mxu0 0.0
    %116 = vmatpush1.msra.mxu0 0.0
    %117 = vmatprep.subr.mxu0 0.0
    %118 = vmatpush1.msra.mxu0 0.0
    %119 = vmatprep.subr.mxu0 0.0
    %120 = vmatpush1.msra.mxu0 0.0
    %121 = vmatprep.subr.mxu0 0.0
    %122 = vmatpush1.msra.mxu0 0.0
    %123 = vmatprep.subr.mxu0 0.0
    %124 = vmatpush1.msra.mxu0 0.0
    %125 = vmatprep.subr.mxu0 0.0
    %126 = vmatpush1.msra.mxu0 0.0
    %127 = vmatprep.subr.mxu0 0.0
    %128 = vmatpush1.msra.mxu0 0.0
    %129 = vmatprep.mubr.f32.mxu0 0.0
    %130 = vmatmul.mubr.f32.gmra.mrb[0].mxu0 %v41
    %v131 = vpop.f32.mrb[0].mxu0
    %v132 = vadd.f32 %v63, %v131
    %v133 = vpop.f32.mrb[0].mxu0
    %134 = vdwg.mxu0
    %v135 = vmul.f32 %v41, %v132
    %v136 = vadd.f32 %v41, %v135
    %s137 = scalar_lea.vmem [#allocation5], 128
    %v138 = vld [vmem:[%s137] sm:$0xff]
    %v139 = vld [vmem:[%s137 + $0x8] sm:$0xff]
    %v140 = vld [vmem:[%s137 + $0x10] sm:$0xff]
    %v141 = vld [vmem:[%s137 + $0x18] sm:$0xff]
    %v142 = vld [vmem:[%s137 + $0x20] sm:$0xff]
    %v143 = vld [vmem:[%s137 + $0x28] sm:$0xff]
    %v144 = vld [vmem:[%s137 + $0x30] sm:$0xff]
    %v145 = vld [vmem:[%s137 + $0x38] sm:$0xff]
    %v146 = vld [vmem:[%s137 + $0x40] sm:$0xff]
    %v147 = vld [vmem:[%s137 + $0x48] sm:$0xff]
    %v148 = vld [vmem:[%s137 + $0x50] sm:$0xff]
    %v149 = vld [vmem:[%s137 + $0x58] sm:$0xff]
    %v150 = vld [vmem:[%s137 + $0x60] sm:$0xff]
    %v151 = vld [vmem:[%s137 + $0x68] sm:$0xff]
    %v152 = vld [vmem:[%s137 + $0x70] sm:$0xff]
    %v153 = vld [vmem:[%s137 + $0x78] sm:$0xff]
    %s154 = scalar_lea.vmem %s2, 1
    %v155 = vld [vmem:[%s154] sm:$0x1]
    %v157 = vlaneseq
    %v158 = vshrl.u32 %v157, 7
    %v159 = vsub.s32 0, %v158
    %v160 = vrot.slane %v155, %v159
    %162 = vmatprep.subr.mxu0 0.0
    %163 = vmatpush1.msra.mxu0 %v138
    %164 = vmatprep.subr.mxu0 0.0
    %165 = vmatpush1.msra.mxu0 %v139
    %166 = vmatprep.subr.mxu0 0.0
    %167 = vmatpush1.msra.mxu0 %v140
    %168 = vmatprep.subr.mxu0 0.0
    %169 = vmatpush1.msra.mxu0 %v141
    %170 = vmatprep.subr.mxu0 0.0
    %171 = vmatpush1.msra.mxu0 %v142
    %172 = vmatprep.subr.mxu0 0.0
    %173 = vmatpush1.msra.mxu0 %v143
    %174 = vmatprep.subr.mxu0 0.0
    %175 = vmatpush1.msra.mxu0 %v144
    %176 = vmatprep.subr.mxu0 0.0
    %177 = vmatpush1.msra.mxu0 %v145
    %178 = vmatprep.subr.mxu0 0.0
    %179 = vmatpush1.msra.mxu0 %v146
    %180 = vmatprep.subr.mxu0 0.0
    %181 = vmatpush1.msra.mxu0 %v147
    %182 = vmatprep.subr.mxu0 0.0
    %183 = vmatpush1.msra.mxu0 %v148
    %184 = vmatprep.subr.mxu0 0.0
    %185 = vmatpush1.msra.mxu0 %v149
    %186 = vmatprep.subr.mxu0 0.0
    %187 = vmatpush1.msra.mxu0 %v150
    %188 = vmatprep.subr.mxu0 0.0
    %189 = vmatpush1.msra.mxu0 %v151
    %190 = vmatprep.subr.mxu0 0.0
    %191 = vmatpush1.msra.mxu0 %v152
    %192 = vmatprep.subr.mxu0 0.0
    %193 = vmatpush1.msra.mxu0 %v153
    %194 = vmatprep.subr.mxu0 0.0
    %195 = vmatpush1.msra.mxu0 0.0
    %196 = vmatprep.subr.mxu0 0.0
    %197 = vmatpush1.msra.mxu0 0.0
    %198 = vmatprep.subr.mxu0 0.0
    %199 = vmatpush1.msra.mxu0 0.0
    %200 = vmatprep.subr.mxu0 0.0
    %201 = vmatpush1.msra.mxu0 0.0
    %202 = vmatprep.subr.mxu0 0.0
    %203 = vmatpush1.msra.mxu0 0.0
    %204 = vmatprep.subr.mxu0 0.0
    %205 = vmatpush1.msra.mxu0 0.0
    %206 = vmatprep.subr.mxu0 0.0
    %207 = vmatpush1.msra.mxu0 0.0
    %208 = vmatprep.subr.mxu0 0.0
    %209 = vmatpush1.msra.mxu0 0.0
    %210 = vmatprep.subr.mxu0 0.0
    %211 = vmatpush1.msra.mxu0 0.0
    %212 = vmatprep.subr.mxu0 0.0
    %213 = vmatpush1.msra.mxu0 0.0
    %214 = vmatprep.subr.mxu0 0.0
    %215 = vmatpush1.msra.mxu0 0.0
    %216 = vmatprep.subr.mxu0 0.0
    %217 = vmatpush1.msra.mxu0 0.0
    %218 = vmatprep.subr.mxu0 0.0
    %219 = vmatpush1.msra.mxu0 0.0
    %220 = vmatprep.subr.mxu0 0.0
    %221 = vmatpush1.msra.mxu0 0.0
    %222 = vmatprep.subr.mxu0 0.0
    %223 = vmatpush1.msra.mxu0 0.0
    %224 = vmatprep.subr.mxu0 0.0
    %225 = vmatpush1.msra.mxu0 0.0
    %226 = vmatprep.mubr.f32.mxu0 0.0
    %227 = vmatmul.mubr.f32.gmra.mrb[0].mxu0 %v136
    %v228 = vpop.f32.mrb[0].mxu0
    %v229 = vadd.f32 %v160, %v228
    %v230 = vpop.f32.mrb[0].mxu0
    %231 = vdwg.mxu0
    %v232 = vmul.f32 %v41, %v229
    %v233 = vadd.f32 %v136, %v232
    %s234 = scalar_lea.vmem [#allocation5], 256
    %v235 = vld [vmem:[%s234] sm:$0xff]
    %v236 = vld [vmem:[%s234 + $0x8] sm:$0xff]
    %v237 = vld [vmem:[%s234 + $0x10] sm:$0xff]
    %v238 = vld [vmem:[%s234 + $0x18] sm:$0xff]
    %v239 = vld [vmem:[%s234 + $0x20] sm:$0xff]
    %v240 = vld [vmem:[%s234 + $0x28] sm:$0xff]
    %v241 = vld [vmem:[%s234 + $0x30] sm:$0xff]
    %v242 = vld [vmem:[%s234 + $0x38] sm:$0xff]
    %v243 = vld [vmem:[%s234 + $0x40] sm:$0xff]
    %v244 = vld [vmem:[%s234 + $0x48] sm:$0xff]
    %v245 = vld [vmem:[%s234 + $0x50] sm:$0xff]
    %v246 = vld [vmem:[%s234 + $0x58] sm:$0xff]
    %v247 = vld [vmem:[%s234 + $0x60] sm:$0xff]
    %v248 = vld [vmem:[%s234 + $0x68] sm:$0xff]
    %v249 = vld [vmem:[%s234 + $0x70] sm:$0xff]
    %v250 = vld [vmem:[%s234 + $0x78] sm:$0xff]
    %s251 = scalar_lea.vmem %s2, 2
    %v252 = vld [vmem:[%s251] sm:$0x1]
    %v254 = vlaneseq
    %v255 = vshrl.u32 %v254, 7
    %v256 = vsub.s32 0, %v255
    %v257 = vrot.slane %v252, %v256
    %259 = vmatprep.subr.mxu0 0.0
    %260 = vmatpush1.msra.mxu0 %v235
    %261 = vmatprep.subr.mxu0 0.0
    %262 = vmatpush1.msra.mxu0 %v236
    %263 = vmatprep.subr.mxu0 0.0
    %264 = vmatpush1.msra.mxu0 %v237
    %265 = vmatprep.subr.mxu0 0.0
    %266 = vmatpush1.msra.mxu0 %v238
    %267 = vmatprep.subr.mxu0 0.0
    %268 = vmatpush1.msra.mxu0 %v239
    %269 = vmatprep.subr.mxu0 0.0
    %270 = vmatpush1.msra.mxu0 %v240
    %271 = vmatprep.subr.mxu0 0.0
    %272 = vmatpush1.msra.mxu0 %v241
    %273 = vmatprep.subr.mxu0 0.0
    %274 = vmatpush1.msra.mxu0 %v242
    %275 = vmatprep.subr.mxu0 0.0
    %276 = vmatpush1.msra.mxu0 %v243
    %277 = vmatprep.subr.mxu0 0.0
    %278 = vmatpush1.msra.mxu0 %v244
    %279 = vmatprep.subr.mxu0 0.0
    %280 = vmatpush1.msra.mxu0 %v245
    %281 = vmatprep.subr.mxu0 0.0
    %282 = vmatpush1.msra.mxu0 %v246
    %283 = vmatprep.subr.mxu0 0.0
    %284 = vmatpush1.msra.mxu0 %v247
    %285 = vmatprep.subr.mxu0 0.0
    %286 = vmatpush1.msra.mxu0 %v248
    %287 = vmatprep.subr.mxu0 0.0
    %288 = vmatpush1.msra.mxu0 %v249
    %289 = vmatprep.subr.mxu0 0.0
    %290 = vmatpush1.msra.mxu0 %v250
    %291 = vmatprep.subr.mxu0 0.0
    %292 = vmatpush1.msra.mxu0 0.0
    %293 = vmatprep.subr.mxu0 0.0
    %294 = vmatpush1.msra.mxu0 0.0
    %295 = vmatprep.subr.mxu0 0.0
    %296 = vmatpush1.msra.mxu0 0.0
    %297 = vmatprep.subr.mxu0 0.0
    %298 = vmatpush1.msra.mxu0 0.0
    %299 = vmatprep.subr.mxu0 0.0
    %300 = vmatpush1.msra.mxu0 0.0
    %301 = vmatprep.subr.mxu0 0.0
    %302 = vmatpush1.msra.mxu0 0.0
    %303 = vmatprep.subr.mxu0 0.0
    %304 = vmatpush1.msra.mxu0 0.0
    %305 = vmatprep.subr.mxu0 0.0
    %306 = vmatpush1.msra.mxu0 0.0
    %307 = vmatprep.subr.mxu0 0.0
    %308 = vmatpush1.msra.mxu0 0.0
    %309 = vmatprep.subr.mxu0 0.0
    %310 = vmatpush1.msra.mxu0 0.0
    %311 = vmatprep.subr.mxu0 0.0
    %312 = vmatpush1.msra.mxu0 0.0
    %313 = vmatprep.subr.mxu0 0.0
    %314 = vmatpush1.msra.mxu0 0.0
    %315 = vmatprep.subr.mxu0 0.0
    %316 = vmatpush1.msra.mxu0 0.0
    %317 = vmatprep.subr.mxu0 0.0
    %318 = vmatpush1.msra.mxu0 0.0
    %319 = vmatprep.subr.mxu0 0.0
    %320 = vmatpush1.msra.mxu0 0.0
    %321 = vmatprep.subr.mxu0 0.0
    %322 = vmatpush1.msra.mxu0 0.0
    %323 = vmatprep.mubr.f32.mxu0 0.0
    %324 = vmatmul.mubr.f32.gmra.mrb[0].mxu0 %v233
    %v325 = vpop.f32.mrb[0].mxu0
    %v326 = vadd.f32 %v257, %v325
    %v327 = vpop.f32.mrb[0].mxu0
    %328 = vdwg.mxu0
    %v329 = vmul.f32 %v41, %v326
    %v330 = vadd.f32 %v233, %v329
    %331 = vst [vmem:[#allocation7] sm:$0xff] %v330
    // Predicated region
    $region22: #{tpu_custom_call.1} parent=1 // pred_check
      _
    $region23: #{tpu_custom_call.1} parent=1 // pred_check_branch
      %333 = sbr.rel (0) target = $region25
    $region24: #{tpu_custom_call.1} parent=1 // pred_region
      %s335 = ssub.s32 128, 128
      %336 = vsyncadd [#allocation4], %s335
      %s338 = sshll.u32 [#allocation7], 4
      %s339 = int_to_ptr.vmem [resolvable:$true] %s338
      %341 = dma.vmem_to_hbm [thread:$0]  %s339, 128, %s3, [#allocation4]
    $region25: #{tpu_custom_call.1} parent=1 // pred_fallthru
      _
    // Predicated region
    $region26: #{tpu_custom_call.1} parent=1 // pred_check
      _
    $region27: #{tpu_custom_call.1} parent=1 // pred_check_branch
      %343 = sbr.rel (0) target = $region29
    $region28: #{tpu_custom_call.1} parent=1 // pred_region
      %344 = dma.done [#allocation4], 128
    $region29: #{tpu_custom_call.1} parent=1 // pred_fallthru
      _
    %345 = vsyncpa [#allocation3], 1
    %346 = vsyncpa [#allocation6], 1
    %347 = vsyncpa [#allocation4], 1

</llo_original>
